<compile_context>
chip_gen: v5e
topology: v5e:2x2
jax: 0.10.0
libtpu: 0.0.40
codegen_flags: <defaults>
</compile_context>

<pallas_src>
import jax
import jax.numpy as jnp
from jax.experimental import pallas as pl
from jax.experimental.pallas import tpu as pltpu


def _cdiv(a, b):
    return (a + b - 1) // b


def _round_up(v, m):
    return _cdiv(v, m) * m


# ---------------------------------------------------------------------------
# Kernels
# ---------------------------------------------------------------------------

def _nnl_kernel_f32out(x_ref, w_ref, b_ref, o_ref):
    """Output dtype is f32: accumulate directly into the resident output block."""
    k = pl.program_id(2)

    @pl.when(k == 0)
    def _():
        o_ref[...] = jnp.broadcast_to(b_ref[...], o_ref.shape)

    o_ref[...] += jnp.dot(x_ref[...], w_ref[...], preferred_element_type=jnp.float32)


def _nnl_kernel_acc(x_ref, w_ref, b_ref, o_ref, acc_ref):
    """Generic path: f32 scratch accumulator, cast to the output dtype at the end."""
    k = pl.program_id(2)

    @pl.when(k == 0)
    def _():
        acc_ref[...] = jnp.zeros_like(acc_ref)

    acc_ref[...] += jnp.dot(x_ref[...], w_ref[...], preferred_element_type=jnp.float32)

    @pl.when(k == pl.num_programs(2) - 1)
    def _():
        o_ref[...] = (acc_ref[...] + b_ref[...]).astype(o_ref.dtype)


# ---------------------------------------------------------------------------
# Tile selection helpers
# ---------------------------------------------------------------------------

def _pick_lane_tile(dim, cap):
    """Multiple-of-128 tile <= cap minimizing the padded size (tie-break: larger tile)."""
    hi = min(cap, _round_up(dim, 128))
    best_t, best_p = 128, _round_up(dim, 128)
    for t in range(128, hi + 1, 128):
        p = _round_up(dim, t)
        if p < best_p or (p == best_p and t > best_t):
            best_t, best_p = t, p
    return best_t


def _pick_sublane_tile(dim, cap, align):
    """align-multiple tile ~<= cap minimizing the padded size."""
    nb = _cdiv(dim, cap)
    return _round_up(_cdiv(dim, nb), align)


# ---------------------------------------------------------------------------
# Wrapper
# ---------------------------------------------------------------------------

def nonneg_linear(x, weight, bias, *, tm=None, tn=None, tk=None,
                  compute_dtype=jnp.bfloat16):
    """y = x @ clamp(weight, 0).T + bias  via a tiled Pallas TPU kernel.

    x      : (..., in_features)
    weight : (out_features, in_features)    -- torch nn.Linear layout
    bias   : (out_features,)
    compute_dtype : MXU input dtype (default bf16; accumulation is always f32).
    """
    *lead, K = x.shape
    N, K2 = weight.shape
    assert K == K2, "in_features mismatch"
    x2d = x.reshape(-1, K)
    B = x2d.shape[0]

    out_dtype = jnp.dtype(x.dtype)
    compute_dtype = jnp.dtype(compute_dtype)
    cbytes = compute_dtype.itemsize
    obytes = out_dtype.itemsize
    align_m = 8 if cbytes >= 4 else (16 if cbytes == 2 else 32)

    small_batch = B <= 64

    # ---- tile selection -----------------------------------------------------
    auto_tm, auto_tn = tm is None, tn is None
    if tm is None:
        tm = _pick_sublane_tile(B, 512, align_m)
    else:
        tm = _round_up(tm, align_m)
    if tn is None:
        tn = _pick_lane_tile(N, 512)
    else:
        tn = _round_up(tn, 128)
    if tk is None:
        # Small-batch (pure weight-streaming) regime: collapse the K grid axis entirely.
        tk = _pick_lane_tile(K, 8192 if small_batch else 2048)
    else:
        tk = _round_up(tk, 128)

    # ---- VMEM working-set cap (~40 MiB: safe on v7x's 64 MiB per-TC VMEM) ----
    def _est(tm_, tn_, tk_):
        return (2 * tm_ * tk_ * cbytes        # x     (double-buffered)
                + 2 * tk_ * tn_ * cbytes      # w     (double-buffered)
                + 2 * tn_ * 4                 # bias  (double-buffered)
                + 2 * tm_ * tn_ * obytes      # out   (double-buffered)
                + tm_ * tn_ * 4)              # f32 accumulator scratch
    budget = 40 * 1024 * 1024
    while _est(tm, tn, tk) > budget and tk > 128:
        tk = max(128, (tk // 2 // 128) * 128)
    while _est(tm, tn, tk) > budget and tn > 128:
        tn = max(128, (tn // 2 // 128) * 128)

    Bp = tm * _cdiv(B, tm)
    Np = tn * _cdiv(N, tn)
    Kp = tk * _cdiv(K, tk)

    # ---- megacore: give v7x's 2nd TensorCore work on a parallel axis ---------
    if auto_tm and auto_tn and (Bp // tm == 1) and (Np // tn == 1):
        if Np >= 256:
            m = Np // 128
            d = max(dd for dd in range(1, m) if m % dd == 0)   # largest proper divisor
            tn = 128 * d                                       # Np unchanged, >= 2 N blocks
        elif B >= 2 * align_m:
            tm = _round_up(_cdiv(B, 2), align_m)
            Bp = tm * _cdiv(B, tm)

    grid = (Bp // tm, Np // tn, Kp // tk)

    # ---- operand preparation --------------------------------------------------
    # Clamp + transpose + pad + cast fused into one expression -> one XLA copy.
    # (For inference-style weight reuse, hoist wp/bp out of the hot path: they depend
    #  only on weight/bias and the tile config.)
    wp = jnp.zeros((Kp, Np), compute_dtype).at[:K, :N].set(
        jnp.maximum(weight, 0.0).astype(compute_dtype).T)
    bp = jnp.zeros((1, Np), jnp.float32).at[0, :N].set(bias.astype(jnp.float32))
    xp = jnp.zeros((Bp, Kp), compute_dtype).at[:B, :K].set(x2d.astype(compute_dtype))

    if out_dtype == jnp.float32:
        kernel = _nnl_kernel_f32out        # accumulate into the resident output block
        scratch = []
    else:
        kernel = _nnl_kernel_acc           # f32 scratch accumulator, cast at the end
        scratch = [pltpu.VMEM((tm, tn), jnp.float32)]

    out = pl.pallas_call(
        kernel,
        out_shape=jax.ShapeDtypeStruct((Bp, Np), out_dtype),
        grid_spec=pltpu.PrefetchScalarGridSpec(
            num_scalar_prefetch=0,
            grid=grid,
            in_specs=[
                pl.BlockSpec((tm, tk), lambda i, j, k: (i, k)),   # x tile
                pl.BlockSpec((tk, tn), lambda i, j, k: (k, j)),   # clamped weight tile
                pl.BlockSpec((1, tn), lambda i, j, k: (0, j)),    # bias row
            ],
            out_specs=pl.BlockSpec((tm, tn), lambda i, j, k: (i, j)),
            scratch_shapes=scratch,
        ),
        compiler_params=pltpu.CompilerParams(
            dimension_semantics=("parallel", "parallel", "arbitrary"),
            vmem_limit_bytes=48 * 1024 * 1024,   # <= v7x's 64 MiB physical per TC
        ),
    )(xp, wp, bp)

    y = out[:B, :N]
    return y.reshape(*lead, N)


if __name__ == "__main__":
    key = jax.random.PRNGKey(0)

    # --- Test 1: the module's small shape (batch=8, in=32, out=32) ---
    B, IN, OUT = 8, 32, 32
    kx, kw, kb = jax.random.split(key, 3)
    bound = 1.0 / jnp.sqrt(jnp.float32(IN))
    weight = jax.random.uniform(kw, (OUT, IN), jnp.float32, -bound, bound)  # torch layout
    bias = jax.random.uniform(kb, (OUT,), jnp.float32, -bound, bound)
    x = jax.random.normal(kx, (B, IN), jnp.float32)

    y_ref = x @ jnp.maximum(weight, 0.0).T + bias[None, :]

    # Default bf16 MXU compute (f32 accumulation) -> loose tolerance.
    y_bf16c = jax.block_until_ready(nonneg_linear(x, weight, bias))
    assert y_bf16c.shape == (B, OUT)
    assert jnp.allclose(y_bf16c, y_ref, atol=7.5e-2, rtol=7.5e-2), "mismatch (bf16 compute)"

    # Explicit f32 compute -> tight tolerance.
    y_f32 = jax.block_until_ready(nonneg_linear(x, weight, bias, compute_dtype=jnp.float32))
    assert jnp.allclose(y_f32, y_ref, atol=1e-5, rtol=1e-5), "mismatch (f32 compute)"

    # --- Test 2: non-divisible shapes, multi-tile grid, K accumulation, f32-out path ---
    B2, IN2, OUT2 = 96, 300, 136
    kx2, kw2, kb2 = jax.random.split(jax.random.PRNGKey(1), 3)
    bound2 = 1.0 / jnp.sqrt(jnp.float32(IN2))
    weight2 = jax.random.uniform(kw2, (OUT2, IN2), jnp.float32, -bound2, bound2)
    bias2 = jax.random.uniform(kb2, (OUT2,), jnp.float32, -bound2, bound2)
    x2 = jax.random.normal(kx2, (B2, IN2), jnp.float32)

    y2 = jax.block_until_ready(
        nonneg_linear(x2, weight2, bias2, tk=128, compute_dtype=jnp.float32))
    y2_ref = x2 @ jnp.maximum(weight2, 0.0).T + bias2[None, :]
    assert y2.shape == (B2, OUT2)
    assert jnp.allclose(y2, y2_ref, atol=1e-4, rtol=1e-4), "mismatch (tiled f32)"

    # --- Test 3: bf16 end-to-end (bf16 output -> scratch-accumulator kernel path) ---
    x3 = x2.astype(jnp.bfloat16)
    w3 = weight2.astype(jnp.bfloat16)
    b3 = bias2.astype(jnp.bfloat16)
    y3 = jax.block_until_ready(nonneg_linear(x3, w3, b3, tk=128))
    y3_ref = (x3.astype(jnp.float32) @ jnp.maximum(w3.astype(jnp.float32), 0.0).T
              + b3.astype(jnp.float32)[None, :])
    assert y3.dtype == jnp.bfloat16
    assert jnp.allclose(y3.astype(jnp.float32), y3_ref, atol=2e-2, rtol=2e-2), \
        "mismatch (bf16 end-to-end)"

    print("KERNEL_OK")
</pallas_src>

<mosaic_0001>
module attributes {stable_mosaic.version = 11 : i64} {
  func.func @_nnl_kernel_f32out(%arg0: i32, %arg1: i32, %arg2: i32, %arg3: memref<16x128xbf16, #tpu.memory_space<vmem>>, %arg4: memref<128x128xbf16, #tpu.memory_space<vmem>>, %arg5: memref<1x128xf32, #tpu.memory_space<vmem>>, %arg6: memref<16x128xf32, #tpu.memory_space<vmem>>) attributes {dimension_semantics = [#tpu.dimension_semantics<parallel>, #tpu.dimension_semantics<parallel>, #tpu.dimension_semantics<arbitrary>], iteration_bounds = array<i64: 1, 1, 1>, scalar_prefetch = 0 : i64, scratch_operands = 0 : i64, tpu.core_type = #tpu.core_type<tc>, window_params = [{transform_indices = @transform_0, window_bounds = array<i64: 16, 128>}, {transform_indices = @transform_1, window_bounds = array<i64: 128, 128>}, {transform_indices = @transform_2, window_bounds = array<i64: 1, 128>}, {transform_indices = @transform_3, window_bounds = array<i64: 16, 128>}]} {
    %c0_i32 = arith.constant 0 : i32
    %0 = arith.cmpi eq, %arg2, %c0_i32 : i32
    %1 = arith.extui %0 : i1 to i32
    %c0_i32_0 = arith.constant 0 : i32
    %2 = arith.cmpi ne, %1, %c0_i32_0 : i32
    scf.if %2 {
      %c0_8 = arith.constant 0 : index
      %c0_9 = arith.constant 0 : index
      %9 = vector.load %arg5[%c0_8, %c0_9] : memref<1x128xf32, #tpu.memory_space<vmem>>, vector<1x128xf32>
      %10 = vector.shape_cast %9 : vector<1x128xf32> to vector<1x128xf32>
      %11 = vector.broadcast %10 : vector<1x128xf32> to vector<16x128xf32>
      %c0_10 = arith.constant 0 : index
      %c0_11 = arith.constant 0 : index
      %12 = vector.load %arg6[%c0_10, %c0_11] : memref<16x128xf32, #tpu.memory_space<vmem>>, vector<16x128xf32>
      tpu.vector_store %arg6[%c0_10, %c0_11], %11 {strides = array<i32>} : memref<16x128xf32, #tpu.memory_space<vmem>>, vector<16x128xf32>,
    } else {
    }
    %c0 = arith.constant 0 : index
    %c0_1 = arith.constant 0 : index
    %3 = vector.load %arg6[%c0, %c0_1] : memref<16x128xf32, #tpu.memory_space<vmem>>, vector<16x128xf32>
    %c0_2 = arith.constant 0 : index
    %c0_3 = arith.constant 0 : index
    %4 = vector.load %arg3[%c0_2, %c0_3] : memref<16x128xbf16, #tpu.memory_space<vmem>>, vector<16x128xbf16>
    %c0_4 = arith.constant 0 : index
    %c0_5 = arith.constant 0 : index
    %5 = vector.load %arg4[%c0_4, %c0_5] : memref<128x128xbf16, #tpu.memory_space<vmem>>, vector<128x128xbf16>
    %cst = arith.constant dense<0.000000e+00> : vector<16x128xf32>
    %6 = tpu.matmul %4, %5, %cst {dimension_numbers = #tpu.dot_dimension_numbers<[1], [0], [0], [1], [0, 0, 1, 1], [], []>} : vector<16x128xbf16>, vector<128x128xbf16>, vector<16x128xf32> -> vector<16x128xf32>
    %7 = arith.addf %3, %6 : vector<16x128xf32>
    %c0_6 = arith.constant 0 : index
    %c0_7 = arith.constant 0 : index
    %8 = vector.load %arg6[%c0_6, %c0_7] : memref<16x128xf32, #tpu.memory_space<vmem>>, vector<16x128xf32>
    tpu.vector_store %arg6[%c0_6, %c0_7], %7 {strides = array<i32>} : memref<16x128xf32, #tpu.memory_space<vmem>>, vector<16x128xf32>,
    return
  }
  func.func @transform_0(%arg0: i32, %arg1: i32, %arg2: i32) -> (i32, i32) {
    %c0_i32 = arith.constant 0 : i32
    return %arg0, %arg2 : i32, i32
  }
  func.func @transform_1(%arg0: i32, %arg1: i32, %arg2: i32) -> (i32, i32) {
    %c0_i32 = arith.constant 0 : i32
    return %arg2, %arg1 : i32, i32
  }
  func.func @transform_2(%arg0: i32, %arg1: i32, %arg2: i32) -> (i32, i32) {
    %c0_i32 = arith.constant 0 : i32
    %c0_i32_0 = arith.constant 0 : i32
    return %c0_i32, %arg1 : i32, i32
  }
  func.func @transform_3(%arg0: i32, %arg1: i32, %arg2: i32) -> (i32, i32) {
    %c0_i32 = arith.constant 0 : i32
    return %arg0, %arg1 : i32, i32
  }
}

</mosaic_0001>

<llo_original>
// kernel: tpu_custom_call.1
$region0: #{tpu_custom_call.1}
  #allocation0 [shape = 'u32[]', space=smem, size = 0x4, offset = 0x4, fixed_abs, tag = 'smem constant byte address 0x4 - core index']
  #allocation1 [shape = 'u32[72,128]{1,0:T(1,128)}', space=vmem, size = 0x9000, scoped, tag = 'internal scratch']
  %s0 = inlined_call_operand.hbm [shape: bf16[16,128], index: 0, kind: input, shape index: {}]
  %s1 = inlined_call_operand.hbm [shape: bf16[128,128], index: 1, kind: input, shape index: {}]
  %s2 = inlined_call_operand.vmem [shape: f32[1,128], index: 2, kind: input, shape index: {}]
  %s3 = inlined_call_operand.hbm [shape: f32[16,128], index: 3, kind: output, shape index: {}]
  %s4 = sld [smem:[#allocation0]]
  $region34: #{tpu_custom_call.1} parent=0
    _
  %s6 = ssub.s32 1, %s4
  %s7 = scalar_select 0, %s6, %s4
  $region1: #{tpu_custom_call.1} parent=0
    #allocation2 [shape = 'u8[4096]{0}', space=vmem, size = 0x1000, scoped, tag = 'input window, operand 0, single buffered']
    #allocation3 [shape = 's32[1]{0}', space=sflag, size = 0x4, scoped, tag = 'scoped memory for tpu_custom_call.1']
    #allocation4 [shape = 's32[1]{0}', space=sflag, size = 0x4, scoped, tag = 'scoped memory for tpu_custom_call.1']
    #allocation5 [shape = 'u8[32768]{0}', space=vmem, size = 0x8000, scoped, tag = 'input window, operand 1, single buffered']
    #allocation6 [shape = 's32[1]{0}', space=sflag, size = 0x4, scoped, tag = 'scoped memory for tpu_custom_call.1']
    #allocation7 [shape = 'u8[8192]{0}', space=vmem, size = 0x2000, scoped, tag = 'output window, operand 0, single buffered']
    %8 = vsyncpa [#allocation3], 0
    %9 = vsyncpa [#allocation6], 0
    %10 = vsyncpa [#allocation4], 0
    // Predicated region
    $region2: #{tpu_custom_call.1} parent=1 // pred_check
      _
    $region3: #{tpu_custom_call.1} parent=1 // pred_check_branch
      %12 = sbr.rel (0) target = $region5
    $region4: #{tpu_custom_call.1} parent=1 // pred_region
      %14 = vsyncadd [#allocation3], 0
      %s15 = sshll.u32 %s0, 4
      %s16 = int_to_ptr.hbm [resolvable:$true] %s15
      %s17 = sshll.u32 [#allocation2], 4
      %s18 = int_to_ptr.vmem [resolvable:$true] %s17
      %23 = dma.hbm_to_vmem [thread:$0]  %s16, 128, %s18, [#allocation3], 64, 64, 4
    $region5: #{tpu_custom_call.1} parent=1 // pred_fallthru
      _
    // Predicated region
    $region6: #{tpu_custom_call.1} parent=1 // pred_check
      _
    $region7: #{tpu_custom_call.1} parent=1 // pred_check_branch
      %25 = sbr.rel (0) target = $region9
    $region8: #{tpu_custom_call.1} parent=1 // pred_region
      %27 = vsyncadd [#allocation6], 0
      %s28 = sshll.u32 %s1, 4
      %s29 = int_to_ptr.hbm [resolvable:$true] %s28
      %s30 = sshll.u32 [#allocation5], 4
      %s31 = int_to_ptr.vmem [resolvable:$true] %s30
      %36 = dma.hbm_to_vmem [thread:$0]  %s29, 1024, %s31, [#allocation6], 64, 64, 4
    $region9: #{tpu_custom_call.1} parent=1 // pred_fallthru
      _
    // Predicated region
    $region10: #{tpu_custom_call.1} parent=1 // pred_check
      _
    $region11: #{tpu_custom_call.1} parent=1 // pred_check_branch
      %38 = sbr.rel (0) target = $region13
    $region12: #{tpu_custom_call.1} parent=1 // pred_region
      _
    $region13: #{tpu_custom_call.1} parent=1 // pred_fallthru
      _
    // Predicated region
    $region14: #{tpu_custom_call.1} parent=1 // pred_check
      _
    $region15: #{tpu_custom_call.1} parent=1 // pred_check_branch
      %40 = sbr.rel (0) target = $region17
    $region16: #{tpu_custom_call.1} parent=1 // pred_region
      %42 = dma.done [#allocation3], 128
    $region17: #{tpu_custom_call.1} parent=1 // pred_fallthru
      _
    // Predicated region
    $region18: #{tpu_custom_call.1} parent=1 // pred_check
      _
    $region19: #{tpu_custom_call.1} parent=1 // pred_check_branch
      %44 = sbr.rel (0) target = $region21
    $region20: #{tpu_custom_call.1} parent=1 // pred_region
      %46 = dma.done [#allocation6], 1024
    $region21: #{tpu_custom_call.1} parent=1 // pred_fallthru
      _
    %p47 = scmp.eq.s32.totalorder 0, 0
    // Predicated region
    $region22: #{tpu_custom_call.1} parent=1 // pred_check
      %p48 = pneg %p47
    $region23: #{tpu_custom_call.1} parent=1 // pred_check_branch
      %50 = sbr.rel (%p48) target = $region25
    $region24: #{tpu_custom_call.1} parent=1 // pred_region
      %v51 = vld [vmem:[%s2] sm:$0x1]
      %v53 = vperm.slane %v51, 0
      %55 = vst [vmem:[#allocation7] sm:$0xff] %v53
      %56 = vst [vmem:[#allocation7 + $0x8] sm:$0xff] %v53
    $region25: #{tpu_custom_call.1} parent=1 // pred_fallthru
      _
    %v57 = vld [vmem:[#allocation7] sm:$0xff]
    %v58 = vld [vmem:[#allocation7 + $0x8] sm:$0xff]
    %v59 = vld [vmem:[#allocation2] sm:$0xf]
    %v60 = vld [vmem:[#allocation2 + $0x4] sm:$0xf]
    %v61 = vld [vmem:[#allocation5] sm:$0xf]
    %v62 = vld [vmem:[#allocation5 + $0x4] sm:$0xf]
    %v63 = vld [vmem:[#allocation5 + $0x8] sm:$0xf]
    %v64 = vld [vmem:[#allocation5 + $0xc] sm:$0xf]
    %v65 = vld [vmem:[#allocation5 + $0x10] sm:$0xf]
    %v66 = vld [vmem:[#allocation5 + $0x14] sm:$0xf]
    %v67 = vld [vmem:[#allocation5 + $0x18] sm:$0xf]
    %v68 = vld [vmem:[#allocation5 + $0x1c] sm:$0xf]
    %v69 = vld [vmem:[#allocation5 + $0x20] sm:$0xf]
    %v70 = vld [vmem:[#allocation5 + $0x24] sm:$0xf]
    %v71 = vld [vmem:[#allocation5 + $0x28] sm:$0xf]
    %v72 = vld [vmem:[#allocation5 + $0x2c] sm:$0xf]
    %v73 = vld [vmem:[#allocation5 + $0x30] sm:$0xf]
    %v74 = vld [vmem:[#allocation5 + $0x34] sm:$0xf]
    %v75 = vld [vmem:[#allocation5 + $0x38] sm:$0xf]
    %v76 = vld [vmem:[#allocation5 + $0x3c] sm:$0xf]
    %v79 = vunpack.c.l.b16 %v59
    %v80 = vunpack.c.l.b16 %v60
    %v81 = vpack.c.b16 %v80, %v79
    %v99 = vunpack.c.l.b16 %v61
    %v100 = vunpack.c.l.b16 %v62
    %v101 = vunpack.c.l.b16 %v63
    %v102 = vunpack.c.l.b16 %v64
    %v103 = vunpack.c.l.b16 %v65
    %v104 = vunpack.c.l.b16 %v66
    %v105 = vunpack.c.l.b16 %v67
    %v106 = vunpack.c.l.b16 %v68
    %v107 = vunpack.c.l.b16 %v69
    %v108 = vunpack.c.l.b16 %v70
    %v109 = vunpack.c.l.b16 %v71
    %v110 = vunpack.c.l.b16 %v72
    %v111 = vunpack.c.l.b16 %v73
    %v112 = vunpack.c.l.b16 %v74
    %v113 = vunpack.c.l.b16 %v75
    %v114 = vunpack.c.l.b16 %v76
    %v115 = vpack.c.b16 %v100, %v99
    %v116 = vpack.c.b16 %v102, %v101
    %v117 = vpack.c.b16 %v104, %v103
    %v118 = vpack.c.b16 %v106, %v105
    %v119 = vpack.c.b16 %v108, %v107
    %v120 = vpack.c.b16 %v110, %v109
    %v121 = vpack.c.b16 %v112, %v111
    %v122 = vpack.c.b16 %v114, %v113
    %131 = vmatpush.bf16.msra.mxu0 %v122
    %132 = vmatpush.bf16.msra.mxu0 %v121
    %133 = vmatpush.bf16.msra.mxu0 %v120
    %134 = vmatpush.bf16.msra.mxu0 %v119
    %135 = vmatpush.bf16.msra.mxu0 %v118
    %136 = vmatpush.bf16.msra.mxu0 %v117
    %137 = vmatpush.bf16.msra.mxu0 %v116
    %138 = vmatpush.bf16.msra.mxu0 %v115
    %139 = vmatmul.bf16.gmra.mxu0 %v81
    %v140 = vpop.f32.mrf.mxu0
    %v141 = vadd.f32 0.0, %v140
    %v142 = vpop.f32.mrf.mxu0
    %v143 = vadd.f32 0.0, %v142
    %144 = vdwg.mxu0
    %v145 = vadd.f32 %v57, %v141
    %v146 = vadd.f32 %v58, %v143
    %147 = vst [vmem:[#allocation7] sm:$0xff] %v145
    %148 = vst [vmem:[#allocation7 + $0x8] sm:$0xff] %v146
    // Predicated region
    $region26: #{tpu_custom_call.1} parent=1 // pred_check
      _
    $region27: #{tpu_custom_call.1} parent=1 // pred_check_branch
      %150 = sbr.rel (0) target = $region29
    $region28: #{tpu_custom_call.1} parent=1 // pred_region
      %152 = vsyncadd [#allocation4], 0
      %s153 = sshll.u32 [#allocation7], 4
      %s154 = int_to_ptr.vmem [resolvable:$true] %s153
      %s155 = sshll.u32 %s3, 4
      %s156 = int_to_ptr.hbm [resolvable:$true] %s155
      %161 = dma.vmem_to_hbm [thread:$0]  %s154, 256, %s156, [#allocation4], 128, 128, 8
    $region29: #{tpu_custom_call.1} parent=1 // pred_fallthru
      _
    // Predicated region
    $region30: #{tpu_custom_call.1} parent=1 // pred_check
      _
    $region31: #{tpu_custom_call.1} parent=1 // pred_check_branch
      %163 = sbr.rel (0) target = $region33
    $region32: #{tpu_custom_call.1} parent=1 // pred_region
      %165 = dma.done [#allocation4], 256
    $region33: #{tpu_custom_call.1} parent=1 // pred_fallthru
      _
    %166 = vsyncpa [#allocation3], 1
    %167 = vsyncpa [#allocation6], 1
    %168 = vsyncpa [#allocation4], 1

</llo_original>
